<compile_context>
chip_gen: v6e
topology: v6e:2x2x1
jax: 0.10.0
libtpu: 0.0.40
codegen_flags: <defaults>
</compile_context>

<pallas_src>
import functools
import math

import jax
import jax.numpy as jnp
from jax.experimental import pallas as pl
from jax.experimental.pallas import tpu as pltpu

_MIB = 1024 * 1024


def _copy_kernel(x_ref, o_ref):
    # Identity copy of the current (tile_rows, cols) tile.
    o_ref[...] = x_ref[...]


def _vmem_budget_bytes():
    """Scoped-VMEM request derived from the actual chip (v7x has 64 MiB)."""
    try:
        cap = pltpu.get_tpu_info().vmem_capacity_bytes
    except Exception:  # interpret mode / unknown chip -> conservative default
        cap = 64 * _MIB
    # Half of physical, never above 48 MiB: 48 MiB on v5e/v6e, 32 MiB on v7x.
    return int(min(cap // 2, 48 * _MIB))


def _choose_slab(total, itemsize, vmem_limit):
    """Pick (rows, cols, tile_rows) for the flat element slab.

    cols is a multiple of 128 (lane-dense, unmasked vst).  tile_rows is a
    sublane-packing multiple dividing rows, sized so that the 4x-tile VMEM
    footprint (in + out, each double-buffered) stays under the VMEM budget,
    and giving >= 2 grid steps for slabs above a few MiB (so both of v7x's
    TensorCores get work and read/write DMAs overlap).
    Returns None if no clean tiling exists (caller uses a plain reshape).
    """
    sub_mult = max(8, 32 // itemsize)   # 8 f32 / 16 bf16 / 32 int8

    rows_cols = None
    for cols in (2048, 1024, 512, 256, 128):
        if total % cols:
            continue
        rows = total // cols
        if rows % sub_mult == 0:
            rows_cols = (rows, cols)
            break
        if rows_cols is None:
            rows_cols = (rows, cols)    # keep a lane-dense fallback
    if rows_cols is None:
        return None
    rows, cols = rows_cols

    # 4x tile lives in VMEM; leave ~1 MiB of headroom under the budget.
    tile_bytes_cap = max(_MIB, vmem_limit // 4 - _MIB)
    max_tile_rows = max(1, tile_bytes_cap // (cols * itemsize))

    slab_bytes = total * itemsize
    min_steps = 2 if slab_bytes > 4 * _MIB else 1

    tile = (min(rows, max_tile_rows) // sub_mult) * sub_mult
    while tile >= sub_mult:
        if rows % tile == 0 and rows // tile >= min_steps:
            return rows, cols, tile
        tile -= sub_mult

    if rows <= max_tile_rows:
        return rows, cols, rows         # single full-extent block: always legal
    return None


@functools.lru_cache(maxsize=None)
def _build_view_copy(out_shape, dtype_name, rows, cols, tile_rows, vmem_limit):
    dtype = jnp.dtype(dtype_name)
    itemsize = dtype.itemsize

    copy = pl.pallas_call(
        _copy_kernel,
        out_shape=jax.ShapeDtypeStruct((rows, cols), dtype),
        grid=(rows // tile_rows,),
        in_specs=[pl.BlockSpec((tile_rows, cols), lambda i: (i, 0))],
        out_specs=pl.BlockSpec((tile_rows, cols), lambda i: (i, 0)),
        cost_estimate=pl.CostEstimate(
            flops=0,
            transcendentals=0,
            bytes_accessed=2 * rows * cols * itemsize,
        ),
        compiler_params=pltpu.CompilerParams(
            dimension_semantics=("parallel",),
            vmem_limit_bytes=vmem_limit,
        ),
    )

    @jax.jit
    def run(x):
        # Both reshapes live inside this single jit -> metadata-only glue.
        return copy(x.reshape(rows, cols)).reshape(out_shape)

    return run


def _resolve_out_shape(x_shape, target_shape):
    b = x_shape[0]
    per_example = math.prod(x_shape[1:])
    shape = list(target_shape)
    if -1 in shape:
        known = math.prod(d for d in shape if d != -1)
        shape[shape.index(-1)] = per_example // known
    if math.prod(shape) != per_example:
        raise ValueError(f"cannot view {x_shape} as ({b}, {tuple(shape)})")
    return (b, *shape)


def view_forward(x, target_shape, *, materialize=False):
    """Reproduces torch's `x.view(x.shape[0], *target_shape)` (forward only)."""
    out_shape = _resolve_out_shape(x.shape, target_shape)

    if not materialize:
        # Production path: a view is metadata-only -> zero HBM traffic.
        return x.reshape(out_shape)

    # Pallas demo path: a real materialized copy into a fresh buffer.
    total = math.prod(x.shape)
    itemsize = jnp.dtype(x.dtype).itemsize
    vmem_limit = _vmem_budget_bytes()
    layout = _choose_slab(total, itemsize, vmem_limit)
    if layout is None:
        # TODO(synk): odd element counts (not a multiple of 128) fall back to
        # the metadata-only reshape instead of a padded-copy kernel.
        return x.reshape(out_shape)

    rows, cols, tile_rows = layout
    run = _build_view_copy(out_shape, jnp.dtype(x.dtype).name,
                           rows, cols, tile_rows, vmem_limit)
    return run(x)


if __name__ == "__main__":
    key = jax.random.PRNGKey(0)
    # Small NCHW input, as a ConvNet would produce before flattening.
    x = jax.random.normal(key, (2, 4, 16, 16), dtype=jnp.float32)

    ref_flat = x.reshape(x.shape[0], -1)

    # Production path (metadata-only reshape).
    out_fast = view_forward(x, (-1,))
    out_fast = jax.block_until_ready(out_fast)
    assert out_fast.shape == (2, 4 * 16 * 16), out_fast.shape
    assert bool(jnp.array_equal(out_fast, ref_flat))

    # Pallas demo path (materialized copy through the kernel).
    out = view_forward(x, (-1,), materialize=True)
    out = jax.block_until_ready(out)
    assert out.shape == (2, 4 * 16 * 16), out.shape
    assert out.dtype == x.dtype
    assert bool(jnp.array_equal(out, ref_flat)), "mismatch vs reference reshape"
    # Input is NOT donated/aliased anymore, so x stays valid:
    assert bool(jnp.array_equal(x.reshape(2, -1), ref_flat))

    # A non-flat target shape, for semantic coverage (both paths).
    out2 = view_forward(x, (16, 8, 8), materialize=True)
    out2 = jax.block_until_ready(out2)
    assert out2.shape == (2, 16, 8, 8), out2.shape
    assert bool(jnp.array_equal(out2, x.reshape(2, 16, 8, 8)))

    print("KERNEL_OK")
</pallas_src>

<mosaic_0001>
module attributes {stable_mosaic.version = 11 : i64} {
  func.func @_copy_kernel(%arg0: i32, %arg1: memref<8x256xf32, #tpu.memory_space<vmem>>, %arg2: memref<8x256xf32, #tpu.memory_space<vmem>>) attributes {dimension_semantics = [#tpu.dimension_semantics<parallel>], iteration_bounds = array<i64: 1>, scalar_prefetch = 0 : i64, scratch_operands = 0 : i64, tpu.core_type = #tpu.core_type<tc>, window_params = [{transform_indices = @transform_0, window_bounds = array<i64: 8, 256>}, {transform_indices = @transform_1, window_bounds = array<i64: 8, 256>}]} {
    %c0 = arith.constant 0 : index
    %c0_0 = arith.constant 0 : index
    %0 = vector.load %arg1[%c0, %c0_0] : memref<8x256xf32, #tpu.memory_space<vmem>>, vector<8x256xf32>
    %c0_1 = arith.constant 0 : index
    %c0_2 = arith.constant 0 : index
    %1 = vector.load %arg2[%c0_1, %c0_2] : memref<8x256xf32, #tpu.memory_space<vmem>>, vector<8x256xf32>
    tpu.vector_store %arg2[%c0_1, %c0_2], %0 {strides = array<i32>} : memref<8x256xf32, #tpu.memory_space<vmem>>, vector<8x256xf32>,
    return
  }
  func.func @transform_0(%arg0: i32) -> (i32, i32) {
    %c0_i32 = arith.constant 0 : i32
    %c0_i32_0 = arith.constant 0 : i32
    return %arg0, %c0_i32 : i32, i32
  }
  func.func @transform_1(%arg0: i32) -> (i32, i32) {
    %c0_i32 = arith.constant 0 : i32
    %c0_i32_0 = arith.constant 0 : i32
    return %arg0, %c0_i32 : i32, i32
  }
}

</mosaic_0001>

<llo_original>
// kernel: run.1
$region0: #{run.1}
  #allocation0 [shape = 'u32[]', space=smem, size = 0x4, offset = 0x4, fixed_abs, tag = 'smem constant byte address 0x4 - core index']
  #allocation1 [shape = 'u32[144,128]{1,0:T(1,128)}', space=vmem, size = 0x12000, scoped, tag = 'internal scratch']
  %s0 = inlined_call_operand.vmem [shape: f32[8,256], index: 0, kind: input, shape index: {}]
  %s1 = inlined_call_operand.vmem [shape: f32[8,256], index: 1, kind: output, shape index: {}]
  %s2 = sld [smem:[#allocation0]]
  $region14: #{run.1} parent=0
    _
  %s4 = ssub.s32 1, %s2
  %s5 = scalar_select 0, %s4, %s2
  // Predicated region
  $region2: #{run.1} parent=0 // pred_check
    _
  $region3: #{run.1} parent=0 // pred_check_branch
    %7 = sbr.rel (0) target = $region5
  $region4: #{run.1} parent=0 // pred_region
    _
  $region5: #{run.1} parent=0 // pred_fallthru
    _
  %v8 = vld [vmem:[%s0] sm:$0xff]
  %v9 = vld [vmem:[%s0 + $0x8] sm:$0xff]
  %10 = vst [vmem:[%s1] sm:$0xff] %v8
  %11 = vst [vmem:[%s1 + $0x8] sm:$0xff] %v9
  // Predicated region
  $region6: #{run.1} parent=0 // pred_check
    _
  $region7: #{run.1} parent=0 // pred_check_branch
    %13 = sbr.rel (0) target = $region9
  $region8: #{run.1} parent=0 // pred_region
    _
  $region9: #{run.1} parent=0 // pred_fallthru
    _
  // Predicated region
  $region10: #{run.1} parent=0 // pred_check
    _
  $region11: #{run.1} parent=0 // pred_check_branch
    %15 = sbr.rel (0) target = $region13
  $region12: #{run.1} parent=0 // pred_region
    _
  $region13: #{run.1} parent=0 // pred_fallthru
    _

</llo_original>
